<compile_context>
chip_gen: v7x
topology: tpu7x:2x2x1
jax: 0.10.0
libtpu: 0.0.40
codegen_flags: <defaults>
</compile_context>

<pallas_src>
import functools

import jax
import jax.numpy as jnp
from jax.experimental import pallas as pl
from jax.experimental.pallas import tpu as pltpu


def _shift_lanes(v, off):
    """s[:, p] = v[:, p + off], zero-filled where p + off is out of range."""
    if off == 0:
        return v
    n = v.shape[-1]
    if off > 0:
        pad = jnp.zeros((v.shape[0], off), v.dtype)
        return jnp.concatenate([v[:, off:], pad], axis=1)
    pad = jnp.zeros((v.shape[0], -off), v.dtype)
    return jnp.concatenate([pad, v[:, :n + off]], axis=1)


def _bottleneck_kernel(x_ref, w1_ref, w2_ref, col_ref, o_ref, *,
                       nb, h, w, c_in, c_inter, c_out):
    """One grid step = nb images, NCHW layout, H*W flattened onto the lane axis.

    x_ref:   (nb, c_in, h*w)           VMEM, input dtype
    w1_ref:  (c_inter, c_in)           VMEM, bf16   (1x1 conv, OI)
    w2_ref:  (9*c_out, c_inter)        VMEM, bf16   (3x3 conv, rows = (dy, dx, o))
    col_ref: (1, h*w)                  VMEM, int32  (pixel column index, p % w)
    o_ref:   (nb, c_in + c_out, h*w)   VMEM, input dtype (x rows || conv2 rows)
    """
    hw = h * w
    # Flat pixel index / column index along the lane axis (no vector div/mod needed).
    p = jax.lax.broadcasted_iota(jnp.int32, (1, hw), 1)
    col = col_ref[...]

    w1 = w1_ref[...]
    w2 = w2_ref[...]

    for i in range(nb):                                    # static unroll over images
        x_i = x_ref[i]                                     # (c_in, hw)
        xr = jnp.maximum(x_i, 0.0).astype(jnp.bfloat16)

        # conv1 (1x1): channel matmul, contraction over c_in (bf16 MXU, f32 acc).
        y1 = jnp.dot(w1, xr, preferred_element_type=jnp.float32)     # (c_inter, hw)
        y1 = jnp.maximum(y1, 0.0).astype(jnp.bfloat16)

        # conv2 (3x3, pad=1): one matmul gives all nine tap responses at once.
        t9 = jnp.dot(w2, y1, preferred_element_type=jnp.float32)     # (9*c_out, hw)

        acc = None
        for dy in range(3):
            for dx in range(3):
                t = dy * 3 + dx
                off = (dy - 1) * w + (dx - 1)
                piece = t9[t * c_out:(t + 1) * c_out, :]              # (c_out, hw)
                shifted = _shift_lanes(piece, off)
                # Zero-padding boundary conditions of the 3x3 conv.
                conds = []
                if dy == 0:
                    conds.append(p >= w)              # row 0 has no upper neighbor
                if dy == 2:
                    conds.append(p < hw - w)          # last row has no lower neighbor
                if dx == 0:
                    conds.append(col >= 1)            # col 0 has no left neighbor
                if dx == 2:
                    conds.append(col <= w - 2)        # last col has no right neighbor
                if conds:
                    valid = conds[0]
                    for c in conds[1:]:
                        valid = valid & c
                    shifted = jnp.where(valid, shifted, 0.0)
                acc = shifted if acc is None else acc + shifted

        # Fused torch.cat([x, out], dim=1): two lane-dense stores, no temporary.
        o_ref[i, :c_in, :] = x_i
        o_ref[i, c_in:, :] = acc.astype(o_ref.dtype)


def _round_up(v, m):
    return -(-v // m) * m


def _vmem_limit_bytes():
    """Raise the scoped-VMEM limit above the default, staying under the physical
    per-core capacity (64 MiB on v7x, 128 MiB on v5e/v6e)."""
    try:
        cap = pltpu.get_tpu_info().vmem_capacity_bytes
    except Exception:
        cap = 64 * 1024 * 1024
    return max(32 * 1024 * 1024, min(int(cap * 0.7), 100 * 1024 * 1024))


def _step_vmem_bytes(nb, h, w, c_in, c_inter, c_out, in_bytes):
    """Padding-aware per-grid-step VMEM footprint: last dim rounded to 128 lanes,
    second-to-last to 8 (32-bit) / 16 (bf16) sublanes (review item 3)."""
    hw = _round_up(h * w, 128)
    c_tot = c_in + c_out
    b = 0
    b += 2 * nb * _round_up(c_in, 8) * hw * in_bytes           # input block (x2 buf)
    b += 2 * nb * _round_up(c_tot, 8) * hw * in_bytes          # output block (x2 buf)
    b += 2 * _round_up(c_inter, 16) * _round_up(c_in, 128) * 2         # w1 bf16
    b += 2 * _round_up(9 * c_out, 16) * _round_up(c_inter, 128) * 2    # w2 bf16
    b += 2 * 8 * hw * 4                                        # column-index map
    per_img = (_round_up(c_in, 16) * hw * 2 +                  # relu(x) bf16
               _round_up(c_inter, 8) * hw * 4 +                # y1 f32
               _round_up(c_inter, 16) * hw * 2 +               # y1 bf16
               _round_up(9 * c_out, 8) * hw * 4 +              # 9-tap matmul result
               3 * _round_up(c_out, 8) * hw * 4)               # acc + shift temps
    return b + 2 * per_img                                     # compiler-temp headroom


def _pick_images_per_step(n, h, w, c_in, c_inter, c_out, in_bytes, budget):
    """Largest divisor nb of N fitting the VMEM budget, capped at N//2 so the grid
    keeps >= 2 steps for v7x's two TensorCores, and at 32 to bound unrolling."""
    cap = min(max(1, n // 2), 32)
    best = 1
    for nb in range(1, cap + 1):
        if n % nb:
            continue
        if _step_vmem_bytes(nb, h, w, c_in, c_inter, c_out, in_bytes) <= budget:
            best = nb
    return best


@jax.jit
def bottleneck_block(x, w1, w2):
    """Drop-in NCHW forward of the PyTorch BottleneckBlock (no layout transposes).

    x:  (N, C_in, H, W)
    w1: (C_inter, C_in, 1, 1)   -- torch conv1.weight
    w2: (C_out, C_inter, 3, 3)  -- torch conv2.weight
    returns (N, C_in + C_out, H, W) = cat([x, conv2(relu(conv1(relu(x))))], 1)
    """
    n, c_in, h, w = x.shape
    c_inter = w1.shape[0]
    c_out = w2.shape[0]
    c_tot = c_in + c_out
    hw = h * w

    # bf16 MXU weights. conv2 rows grouped by tap (dy, dx): one matmul for all taps.
    w1m = w1.reshape(c_inter, c_in).astype(jnp.bfloat16)
    w2m = jnp.transpose(w2, (2, 3, 0, 1)).reshape(9 * c_out, c_inter).astype(jnp.bfloat16)

    # Free row-major views: lane axis = H*W (dense), sublane axis = channels.
    x3 = x.reshape(n, c_in, hw)
    colmap = (jnp.arange(hw, dtype=jnp.int32) % w).reshape(1, hw)

    in_bytes = jnp.dtype(x.dtype).itemsize
    vmem_limit = _vmem_limit_bytes()
    nb = _pick_images_per_step(n, h, w, c_in, c_inter, c_out, in_bytes,
                               int(vmem_limit * 0.9))

    kernel = functools.partial(_bottleneck_kernel, nb=nb, h=h, w=w,
                               c_in=c_in, c_inter=c_inter, c_out=c_out)

    out3 = pl.pallas_call(
        kernel,
        out_shape=jax.ShapeDtypeStruct((n, c_tot, hw), x.dtype),
        grid_spec=pltpu.PrefetchScalarGridSpec(
            num_scalar_prefetch=0,
            grid=(n // nb,),
            in_specs=[
                pl.BlockSpec((nb, c_in, hw), lambda g: (g, 0, 0)),
                # Weight / index-map tiles are tiny; default double buffering kept
                # (pl.Buffered(1) could reclaim ~0.5 MiB on v7x if ever needed).
                pl.BlockSpec((c_inter, c_in), lambda g: (0, 0)),
                pl.BlockSpec((9 * c_out, c_inter), lambda g: (0, 0)),
                pl.BlockSpec((1, hw), lambda g: (0, 0)),
            ],
            out_specs=pl.BlockSpec((nb, c_tot, hw), lambda g: (g, 0, 0)),
        ),
        compiler_params=pltpu.CompilerParams(
            dimension_semantics=("parallel",),
            vmem_limit_bytes=vmem_limit,
        ),
    )(x3, w1m, w2m, colmap)

    # Free row-major view back to NCHW (identical HBM layout).
    return out3.reshape(n, c_tot, h, w)


def reference_forward(x, w1, w2):
    """Pure-JAX f32 reference with identical semantics (sanity check)."""
    dn = ("NCHW", "OIHW", "NCHW")
    xh = jnp.maximum(x, 0.0)
    y1 = jax.lax.conv_general_dilated(xh, w1, (1, 1), "VALID", dimension_numbers=dn)
    y1 = jnp.maximum(y1, 0.0)
    y2 = jax.lax.conv_general_dilated(y1, w2, (1, 1), ((1, 1), (1, 1)),
                                      dimension_numbers=dn)
    return jnp.concatenate([x, y2], axis=1)


if __name__ == "__main__":
    # Small deterministic config: batch=2, in_planes=4, out_planes=4, 16x16.
    N, in_planes, out_planes, H, W = 2, 4, 4, 16, 16
    inter_planes = out_planes * 4

    key = jax.random.PRNGKey(0)
    kx, k1, k2 = jax.random.split(key, 3)

    x = jax.random.normal(kx, (N, in_planes, H, W), dtype=jnp.float32)
    # torch conv1.weight: (inter, in, 1, 1); torch conv2.weight: (out, inter, 3, 3)
    w1 = jax.random.normal(k1, (inter_planes, in_planes, 1, 1), dtype=jnp.float32) * 0.1
    w2 = jax.random.normal(k2, (out_planes, inter_planes, 3, 3), dtype=jnp.float32) * 0.1

    y = bottleneck_block(x, w1, w2)
    jax.block_until_ready(y)

    y_ref = reference_forward(x, w1, w2)
    assert y.shape == (N, in_planes + out_planes, H, W), y.shape
    max_err = float(jnp.max(jnp.abs(y - y_ref)))
    # bf16 MXU operands vs. f32 reference -> loosened tolerance (inference-grade).
    assert jnp.allclose(y, y_ref, atol=2e-2, rtol=2e-2), f"mismatch, max_err={max_err}"

    print("KERNEL_OK")
</pallas_src>

<mosaic_0001>
module attributes {stable_mosaic.version = 11 : i64} {
  func.func @_bottleneck_kernel(%arg0: i32, %arg1: memref<1x4x256xf32, #tpu.memory_space<vmem>>, %arg2: memref<16x4xbf16, #tpu.memory_space<vmem>>, %arg3: memref<36x16xbf16, #tpu.memory_space<vmem>>, %arg4: memref<1x256xi32, #tpu.memory_space<vmem>>, %arg5: memref<1x8x256xf32, #tpu.memory_space<vmem>>) attributes {dimension_semantics = [#tpu.dimension_semantics<parallel>], iteration_bounds = array<i64: 2>, scalar_prefetch = 0 : i64, scratch_operands = 0 : i64, tpu.core_type = #tpu.core_type<tc>, window_params = [{transform_indices = @transform_0, window_bounds = array<i64: 1, 4, 256>}, {pipeline_mode = #tpu.pipeline_mode<synchronous>, transform_indices = @transform_1, window_bounds = array<i64: 16, 4>}, {pipeline_mode = #tpu.pipeline_mode<synchronous>, transform_indices = @transform_2, window_bounds = array<i64: 36, 16>}, {pipeline_mode = #tpu.pipeline_mode<synchronous>, transform_indices = @transform_3, window_bounds = array<i64: 1, 256>}, {transform_indices = @transform_4, window_bounds = array<i64: 1, 8, 256>}]} {
    %0 = tpu.iota {dimensions = array<i32: 1>} : vector<1x256xi32>
    %c0 = arith.constant 0 : index
    %c0_0 = arith.constant 0 : index
    %1 = vector.load %arg4[%c0, %c0_0] : memref<1x256xi32, #tpu.memory_space<vmem>>, vector<1x256xi32>
    %c0_1 = arith.constant 0 : index
    %c0_2 = arith.constant 0 : index
    %2 = vector.load %arg2[%c0_1, %c0_2] : memref<16x4xbf16, #tpu.memory_space<vmem>>, vector<16x4xbf16>
    %c0_3 = arith.constant 0 : index
    %c0_4 = arith.constant 0 : index
    %3 = vector.load %arg3[%c0_3, %c0_4] : memref<36x16xbf16, #tpu.memory_space<vmem>>, vector<36x16xbf16>
    %c0_5 = arith.constant 0 : index
    %c0_6 = arith.constant 0 : index
    %c0_7 = arith.constant 0 : index
    %4 = vector.load %arg1[%c0_5, %c0_6, %c0_7] : memref<1x4x256xf32, #tpu.memory_space<vmem>>, vector<1x4x256xf32>
    %5 = vector.shape_cast %4 : vector<1x4x256xf32> to vector<4x256xf32>
    %cst = arith.constant 0.000000e+00 : f32
    %6 = vector.broadcast %cst : f32 to vector<4x256xf32>
    %7 = arith.maximumf %5, %6 : vector<4x256xf32>
    %8 = arith.truncf %7 : vector<4x256xf32> to vector<4x256xbf16>
    %cst_8 = arith.constant dense<0.000000e+00> : vector<16x256xf32>
    %9 = tpu.matmul %2, %8, %cst_8 {dimension_numbers = #tpu.dot_dimension_numbers<[1], [0], [0], [1], [0, 0, 1, 1], [], []>} : vector<16x4xbf16>, vector<4x256xbf16>, vector<16x256xf32> -> vector<16x256xf32>
    %cst_9 = arith.constant 0.000000e+00 : f32
    %10 = vector.broadcast %cst_9 : f32 to vector<16x256xf32>
    %11 = arith.maximumf %9, %10 : vector<16x256xf32>
    %12 = arith.truncf %11 : vector<16x256xf32> to vector<16x256xbf16>
    %cst_10 = arith.constant dense<0.000000e+00> : vector<36x256xf32>
    %13 = tpu.matmul %3, %12, %cst_10 {dimension_numbers = #tpu.dot_dimension_numbers<[1], [0], [0], [1], [0, 0, 1, 1], [], []>} : vector<36x16xbf16>, vector<16x256xbf16>, vector<36x256xf32> -> vector<36x256xf32>
    %14 = vector.extract_strided_slice %13 {offsets = [0, 0], sizes = [4, 256], strides = [1, 1]} : vector<36x256xf32> to vector<4x256xf32>
    %cst_11 = arith.constant 0.000000e+00 : f32
    %15 = vector.broadcast %cst_11 : f32 to vector<4x17xf32>
    %16 = vector.extract_strided_slice %14 {offsets = [0, 0], sizes = [4, 239], strides = [1, 1]} : vector<4x256xf32> to vector<4x239xf32>
    %17 = tpu.concatenate %15, %16 in 1 : vector<4x17xf32>, vector<4x239xf32> -> vector<4x256xf32>
    %c16_i32 = arith.constant 16 : i32
    %18 = vector.broadcast %c16_i32 : i32 to vector<1x256xi32>
    %19 = arith.cmpi sge, %0, %18 : vector<1x256xi32>
    %c1_i32 = arith.constant 1 : i32
    %20 = vector.broadcast %c1_i32 : i32 to vector<1x256xi32>
    %21 = arith.cmpi sge, %1, %20 : vector<1x256xi32>
    %22 = arith.andi %19, %21 : vector<1x256xi1>
    %cst_12 = arith.constant 0.000000e+00 : f32
    %23 = vector.shape_cast %22 : vector<1x256xi1> to vector<1x256xi1>
    %24 = vector.broadcast %23 : vector<1x256xi1> to vector<4x256xi1>
    %25 = vector.broadcast %cst_12 : f32 to vector<4x256xf32>
    %26 = arith.select %24, %17, %25 : vector<4x256xi1>, vector<4x256xf32>
    %27 = vector.extract_strided_slice %13 {offsets = [4, 0], sizes = [4, 256], strides = [1, 1]} : vector<36x256xf32> to vector<4x256xf32>
    %cst_13 = arith.constant 0.000000e+00 : f32
    %28 = vector.broadcast %cst_13 : f32 to vector<4x16xf32>
    %29 = vector.extract_strided_slice %27 {offsets = [0, 0], sizes = [4, 240], strides = [1, 1]} : vector<4x256xf32> to vector<4x240xf32>
    %30 = tpu.concatenate %28, %29 in 1 : vector<4x16xf32>, vector<4x240xf32> -> vector<4x256xf32>
    %c16_i32_14 = arith.constant 16 : i32
    %31 = vector.broadcast %c16_i32_14 : i32 to vector<1x256xi32>
    %32 = arith.cmpi sge, %0, %31 : vector<1x256xi32>
    %cst_15 = arith.constant 0.000000e+00 : f32
    %33 = vector.shape_cast %32 : vector<1x256xi1> to vector<1x256xi1>
    %34 = vector.broadcast %33 : vector<1x256xi1> to vector<4x256xi1>
    %35 = vector.broadcast %cst_15 : f32 to vector<4x256xf32>
    %36 = arith.select %34, %30, %35 : vector<4x256xi1>, vector<4x256xf32>
    %37 = arith.addf %26, %36 : vector<4x256xf32>
    %38 = vector.extract_strided_slice %13 {offsets = [8, 0], sizes = [4, 256], strides = [1, 1]} : vector<36x256xf32> to vector<4x256xf32>
    %cst_16 = arith.constant 0.000000e+00 : f32
    %39 = vector.broadcast %cst_16 : f32 to vector<4x15xf32>
    %40 = vector.extract_strided_slice %38 {offsets = [0, 0], sizes = [4, 241], strides = [1, 1]} : vector<4x256xf32> to vector<4x241xf32>
    %41 = tpu.concatenate %39, %40 in 1 : vector<4x15xf32>, vector<4x241xf32> -> vector<4x256xf32>
    %c16_i32_17 = arith.constant 16 : i32
    %42 = vector.broadcast %c16_i32_17 : i32 to vector<1x256xi32>
    %43 = arith.cmpi sge, %0, %42 : vector<1x256xi32>
    %c14_i32 = arith.constant 14 : i32
    %44 = vector.broadcast %c14_i32 : i32 to vector<1x256xi32>
    %45 = arith.cmpi sle, %1, %44 : vector<1x256xi32>
    %46 = arith.andi %43, %45 : vector<1x256xi1>
    %cst_18 = arith.constant 0.000000e+00 : f32
    %47 = vector.shape_cast %46 : vector<1x256xi1> to vector<1x256xi1>
    %48 = vector.broadcast %47 : vector<1x256xi1> to vector<4x256xi1>
    %49 = vector.broadcast %cst_18 : f32 to vector<4x256xf32>
    %50 = arith.select %48, %41, %49 : vector<4x256xi1>, vector<4x256xf32>
    %51 = arith.addf %37, %50 : vector<4x256xf32>
    %52 = vector.extract_strided_slice %13 {offsets = [12, 0], sizes = [4, 256], strides = [1, 1]} : vector<36x256xf32> to vector<4x256xf32>
    %cst_19 = arith.constant 0.000000e+00 : f32
    %53 = vector.broadcast %cst_19 : f32 to vector<4x1xf32>
    %54 = vector.extract_strided_slice %52 {offsets = [0, 0], sizes = [4, 255], strides = [1, 1]} : vector<4x256xf32> to vector<4x255xf32>
    %55 = tpu.concatenate %53, %54 in 1 : vector<4x1xf32>, vector<4x255xf32> -> vector<4x256xf32>
    %c1_i32_20 = arith.constant 1 : i32
    %56 = vector.broadcast %c1_i32_20 : i32 to vector<1x256xi32>
    %57 = arith.cmpi sge, %1, %56 : vector<1x256xi32>
    %cst_21 = arith.constant 0.000000e+00 : f32
    %58 = vector.shape_cast %57 : vector<1x256xi1> to vector<1x256xi1>
    %59 = vector.broadcast %58 : vector<1x256xi1> to vector<4x256xi1>
    %60 = vector.broadcast %cst_21 : f32 to vector<4x256xf32>
    %61 = arith.select %59, %55, %60 : vector<4x256xi1>, vector<4x256xf32>
    %62 = arith.addf %51, %61 : vector<4x256xf32>
    %63 = vector.extract_strided_slice %13 {offsets = [16, 0], sizes = [4, 256], strides = [1, 1]} : vector<36x256xf32> to vector<4x256xf32>
    %64 = arith.addf %62, %63 : vector<4x256xf32>
    %65 = vector.extract_strided_slice %13 {offsets = [20, 0], sizes = [4, 256], strides = [1, 1]} : vector<36x256xf32> to vector<4x256xf32>
    %cst_22 = arith.constant 0.000000e+00 : f32
    %66 = vector.broadcast %cst_22 : f32 to vector<4x1xf32>
    %67 = vector.extract_strided_slice %65 {offsets = [0, 1], sizes = [4, 255], strides = [1, 1]} : vector<4x256xf32> to vector<4x255xf32>
    %68 = tpu.concatenate %67, %66 in 1 : vector<4x255xf32>, vector<4x1xf32> -> vector<4x256xf32>
    %c14_i32_23 = arith.constant 14 : i32
    %69 = vector.broadcast %c14_i32_23 : i32 to vector<1x256xi32>
    %70 = arith.cmpi sle, %1, %69 : vector<1x256xi32>
    %cst_24 = arith.constant 0.000000e+00 : f32
    %71 = vector.shape_cast %70 : vector<1x256xi1> to vector<1x256xi1>
    %72 = vector.broadcast %71 : vector<1x256xi1> to vector<4x256xi1>
    %73 = vector.broadcast %cst_24 : f32 to vector<4x256xf32>
    %74 = arith.select %72, %68, %73 : vector<4x256xi1>, vector<4x256xf32>
    %75 = arith.addf %64, %74 : vector<4x256xf32>
    %76 = vector.extract_strided_slice %13 {offsets = [24, 0], sizes = [4, 256], strides = [1, 1]} : vector<36x256xf32> to vector<4x256xf32>
    %cst_25 = arith.constant 0.000000e+00 : f32
    %77 = vector.broadcast %cst_25 : f32 to vector<4x15xf32>
    %78 = vector.extract_strided_slice %76 {offsets = [0, 15], sizes = [4, 241], strides = [1, 1]} : vector<4x256xf32> to vector<4x241xf32>
    %79 = tpu.concatenate %78, %77 in 1 : vector<4x241xf32>, vector<4x15xf32> -> vector<4x256xf32>
    %c240_i32 = arith.constant 240 : i32
    %80 = vector.broadcast %c240_i32 : i32 to vector<1x256xi32>
    %81 = arith.cmpi slt, %0, %80 : vector<1x256xi32>
    %c1_i32_26 = arith.constant 1 : i32
    %82 = vector.broadcast %c1_i32_26 : i32 to vector<1x256xi32>
    %83 = arith.cmpi sge, %1, %82 : vector<1x256xi32>
    %84 = arith.andi %81, %83 : vector<1x256xi1>
    %cst_27 = arith.constant 0.000000e+00 : f32
    %85 = vector.shape_cast %84 : vector<1x256xi1> to vector<1x256xi1>
    %86 = vector.broadcast %85 : vector<1x256xi1> to vector<4x256xi1>
    %87 = vector.broadcast %cst_27 : f32 to vector<4x256xf32>
    %88 = arith.select %86, %79, %87 : vector<4x256xi1>, vector<4x256xf32>
    %89 = arith.addf %75, %88 : vector<4x256xf32>
    %90 = vector.extract_strided_slice %13 {offsets = [28, 0], sizes = [4, 256], strides = [1, 1]} : vector<36x256xf32> to vector<4x256xf32>
    %cst_28 = arith.constant 0.000000e+00 : f32
    %91 = vector.broadcast %cst_28 : f32 to vector<4x16xf32>
    %92 = vector.extract_strided_slice %90 {offsets = [0, 16], sizes = [4, 240], strides = [1, 1]} : vector<4x256xf32> to vector<4x240xf32>
    %93 = tpu.concatenate %92, %91 in 1 : vector<4x240xf32>, vector<4x16xf32> -> vector<4x256xf32>
    %c240_i32_29 = arith.constant 240 : i32
    %94 = vector.broadcast %c240_i32_29 : i32 to vector<1x256xi32>
    %95 = arith.cmpi slt, %0, %94 : vector<1x256xi32>
    %cst_30 = arith.constant 0.000000e+00 : f32
    %96 = vector.shape_cast %95 : vector<1x256xi1> to vector<1x256xi1>
    %97 = vector.broadcast %96 : vector<1x256xi1> to vector<4x256xi1>
    %98 = vector.broadcast %cst_30 : f32 to vector<4x256xf32>
    %99 = arith.select %97, %93, %98 : vector<4x256xi1>, vector<4x256xf32>
    %100 = arith.addf %89, %99 : vector<4x256xf32>
    %101 = vector.extract_strided_slice %13 {offsets = [32, 0], sizes = [4, 256], strides = [1, 1]} : vector<36x256xf32> to vector<4x256xf32>
    %cst_31 = arith.constant 0.000000e+00 : f32
    %102 = vector.broadcast %cst_31 : f32 to vector<4x17xf32>
    %103 = vector.extract_strided_slice %101 {offsets = [0, 17], sizes = [4, 239], strides = [1, 1]} : vector<4x256xf32> to vector<4x239xf32>
    %104 = tpu.concatenate %103, %102 in 1 : vector<4x239xf32>, vector<4x17xf32> -> vector<4x256xf32>
    %c240_i32_32 = arith.constant 240 : i32
    %105 = vector.broadcast %c240_i32_32 : i32 to vector<1x256xi32>
    %106 = arith.cmpi slt, %0, %105 : vector<1x256xi32>
    %c14_i32_33 = arith.constant 14 : i32
    %107 = vector.broadcast %c14_i32_33 : i32 to vector<1x256xi32>
    %108 = arith.cmpi sle, %1, %107 : vector<1x256xi32>
    %109 = arith.andi %106, %108 : vector<1x256xi1>
    %cst_34 = arith.constant 0.000000e+00 : f32
    %110 = vector.shape_cast %109 : vector<1x256xi1> to vector<1x256xi1>
    %111 = vector.broadcast %110 : vector<1x256xi1> to vector<4x256xi1>
    %112 = vector.broadcast %cst_34 : f32 to vector<4x256xf32>
    %113 = arith.select %111, %104, %112 : vector<4x256xi1>, vector<4x256xf32>
    %114 = arith.addf %100, %113 : vector<4x256xf32>
    %c0_35 = arith.constant 0 : index
    %c0_36 = arith.constant 0 : index
    %c0_37 = arith.constant 0 : index
    %115 = vector.load %arg5[%c0_35, %c0_36, %c0_37] : memref<1x8x256xf32, #tpu.memory_space<vmem>>, vector<1x4x256xf32>
    %116 = vector.shape_cast %115 : vector<1x4x256xf32> to vector<4x256xf32>
    %117 = vector.shape_cast %5 : vector<4x256xf32> to vector<1x4x256xf32>
    tpu.vector_store %arg5[%c0_35, %c0_36, %c0_37], %117 {strides = array<i32>} : memref<1x8x256xf32, #tpu.memory_space<vmem>>, vector<1x4x256xf32>,
    %c0_38 = arith.constant 0 : index
    %c4 = arith.constant 4 : index
    %c0_39 = arith.constant 0 : index
    %118 = vector.load %arg5[%c0_38, %c4, %c0_39] : memref<1x8x256xf32, #tpu.memory_space<vmem>>, vector<1x4x256xf32>
    %119 = vector.shape_cast %118 : vector<1x4x256xf32> to vector<4x256xf32>
    %120 = vector.shape_cast %114 : vector<4x256xf32> to vector<1x4x256xf32>
    tpu.vector_store %arg5[%c0_38, %c4, %c0_39], %120 {strides = array<i32>} : memref<1x8x256xf32, #tpu.memory_space<vmem>>, vector<1x4x256xf32>,
    return
  }
  func.func @transform_0(%arg0: i32) -> (i32, i32, i32) {
    %c0_i32 = arith.constant 0 : i32
    %c0_i32_0 = arith.constant 0 : i32
    %c0_i32_1 = arith.constant 0 : i32
    return %arg0, %c0_i32, %c0_i32_0 : i32, i32, i32
  }
  func.func @transform_1(%arg0: i32) -> (i32, i32) {
    %c0_i32 = arith.constant 0 : i32
    %c0_i32_0 = arith.constant 0 : i32
    %c0_i32_1 = arith.constant 0 : i32
    return %c0_i32, %c0_i32_0 : i32, i32
  }
  func.func @transform_2(%arg0: i32) -> (i32, i32) {
    %c0_i32 = arith.constant 0 : i32
    %c0_i32_0 = arith.constant 0 : i32
    %c0_i32_1 = arith.constant 0 : i32
    return %c0_i32, %c0_i32_0 : i32, i32
  }
  func.func @transform_3(%arg0: i32) -> (i32, i32) {
    %c0_i32 = arith.constant 0 : i32
    %c0_i32_0 = arith.constant 0 : i32
    %c0_i32_1 = arith.constant 0 : i32
    return %c0_i32, %c0_i32_0 : i32, i32
  }
  func.func @transform_4(%arg0: i32) -> (i32, i32, i32) {
    %c0_i32 = arith.constant 0 : i32
    %c0_i32_0 = arith.constant 0 : i32
    %c0_i32_1 = arith.constant 0 : i32
    return %arg0, %c0_i32, %c0_i32_0 : i32, i32, i32
  }
}

</mosaic_0001>

<llo_original>
// kernel: bottleneck_block.1
$region0: #{bottleneck_block.1}
  #allocation0 [shape = 'u32[]', space=smem, size = 0x4, offset = 0x4, fixed_abs, tag = 'smem constant byte address 0x4 - core index']
  #allocation1 [shape = 'u32[144,128]{1,0:T(1,128)}', space=vmem, size = 0x12000, scoped, tag = 'internal scratch']
  %s0 = inlined_call_operand.vmem [shape: f32[2,4,256], index: 0, kind: input, shape index: {}]
  %s1 = inlined_call_operand.vmem [shape: bf16[16,4], index: 1, kind: input, shape index: {}]
  %s2 = inlined_call_operand.vmem [shape: bf16[36,16], index: 2, kind: input, shape index: {}]
  %s3 = inlined_call_operand.vmem [shape: s32[1,256], index: 3, kind: input, shape index: {}]
  %s4 = inlined_call_operand.vmem [shape: f32[2,8,256], index: 4, kind: output, shape index: {}]
  %s5 = sld [smem:[#allocation0]]
  $region49: #{bottleneck_block.1} parent=0
    _
  %s7 = ssub.s32 1, %s5
  %s8 = scalar_select 0, %s7, %s5
  loop: start=0, step=1, limit=4
  $region2: #{bottleneck_block.1} parent=0 // loop_pre_header
    _
  $region3: #{bottleneck_block.1} parent=0 // loop_header
    %s10 = sphi 0, %s14
    %p11 = scmp.ge.s32.totalorder %s10, 4
    %s20 = sphi 0, %s22
    %s23 = sphi 0, %s20
    %s24 = sphi 0, %s23
    %s40 = sphi 0, %s24
    %s44 = sphi 0, %s44
    %s46 = sphi 0, %s44
    %s47 = sphi 0, %s46
    %s61 = sphi 0, %s47
    %s65 = sphi 0, %s65
    %s67 = sphi 0, %s65
    %s68 = sphi 0, %s67
    %s82 = sphi 0, %s68
    %s86 = sphi 0, %s86
    %s88 = sphi 0, %s86
    %s89 = sphi 0, %s88
    %s103 = sphi 0, %s89
    %s109 = sphi 0, %s111
    %s112 = sphi 0, %s109
    %s113 = sphi 0, %s112
    %s129 = sphi 0, %s113
  $region4: #{bottleneck_block.1} parent=0 // loop_header_branch
    %13 = sbr.rel (%p11) target = $region8
  $region5: #{bottleneck_block.1} parent=0 // loop_body
    %s15 = ssub.s32 %s10, 1
    %s16 = ssub.s32 %s10, 2
    %s17 = sadd.s32 %s10, 1
    %s18 = ssub.s32 %s10, %s17
    %p19 = scmp.eq.s32.totalorder %s18, 0
    %s21 = sadd.s32 %s20, 1
    %s22 = scalar_select %p19, %s20, %s21
    %p25 = pneg %p19
    %p26 = scmp.eq.s32.totalorder %s10, 1
    %p27 = por %p25, %p26
    %p28 = scmp.ne.s32.totalorder %s20, %s23
    %p29 = scmp.eq.s32.totalorder %s10, 0
    %p30 = por %p28, %p29
    %p31 = scmp.ne.s32.totalorder %s20, %s23
    %p32 = scmp.eq.s32.totalorder %s15, 1
    %p33 = por %p31, %p32
    %p34 = scmp.ne.s32.totalorder %s23, %s24
    %p35 = scmp.eq.s32.totalorder %s15, 0
    %p36 = por %p34, %p35
    %p37 = scmp.ne.s32.totalorder %s23, %s24
    %p38 = scmp.eq.s32.totalorder %s16, 1
    %p39 = por %p37, %p38
    %p41 = scmp.ne.s32.totalorder %s24, %s40
    %p42 = scmp.eq.s32.totalorder %s16, 0
    %p43 = por %p41, %p42
    %s45 = sadd.s32 %s44, 1
    %p48 = scmp.eq.s32.totalorder %s10, 1
    %p49 = scmp.ne.s32.totalorder %s44, %s46
    %p50 = scmp.eq.s32.totalorder %s10, 0
    %p51 = por %p49, %p50
    %p52 = scmp.ne.s32.totalorder %s44, %s46
    %p53 = scmp.eq.s32.totalorder %s15, 1
    %p54 = por %p52, %p53
    %p55 = scmp.ne.s32.totalorder %s46, %s47
    %p56 = scmp.eq.s32.totalorder %s15, 0
    %p57 = por %p55, %p56
    %p58 = scmp.ne.s32.totalorder %s46, %s47
    %p59 = scmp.eq.s32.totalorder %s16, 1
    %p60 = por %p58, %p59
    %p62 = scmp.ne.s32.totalorder %s47, %s61
    %p63 = scmp.eq.s32.totalorder %s16, 0
    %p64 = por %p62, %p63
    %s66 = sadd.s32 %s65, 1
    %p69 = scmp.eq.s32.totalorder %s10, 1
    %p70 = scmp.ne.s32.totalorder %s65, %s67
    %p71 = scmp.eq.s32.totalorder %s10, 0
    %p72 = por %p70, %p71
    %p73 = scmp.ne.s32.totalorder %s65, %s67
    %p74 = scmp.eq.s32.totalorder %s15, 1
    %p75 = por %p73, %p74
    %p76 = scmp.ne.s32.totalorder %s67, %s68
    %p77 = scmp.eq.s32.totalorder %s15, 0
    %p78 = por %p76, %p77
    %p79 = scmp.ne.s32.totalorder %s67, %s68
    %p80 = scmp.eq.s32.totalorder %s16, 1
    %p81 = por %p79, %p80
    %p83 = scmp.ne.s32.totalorder %s68, %s82
    %p84 = scmp.eq.s32.totalorder %s16, 0
    %p85 = por %p83, %p84
    %s87 = sadd.s32 %s86, 1
    %p90 = scmp.eq.s32.totalorder %s10, 1
    %p91 = scmp.ne.s32.totalorder %s86, %s88
    %p92 = scmp.eq.s32.totalorder %s10, 0
    %p93 = por %p91, %p92
    %p94 = scmp.ne.s32.totalorder %s86, %s88
    %p95 = scmp.eq.s32.totalorder %s15, 1
    %p96 = por %p94, %p95
    %p97 = scmp.ne.s32.totalorder %s88, %s89
    %p98 = scmp.eq.s32.totalorder %s15, 0
    %p99 = por %p97, %p98
    %p100 = scmp.ne.s32.totalorder %s88, %s89
    %p101 = scmp.eq.s32.totalorder %s16, 1
    %p102 = por %p100, %p101
    %p104 = scmp.ne.s32.totalorder %s89, %s103
    %p105 = scmp.eq.s32.totalorder %s16, 0
    %p106 = por %p104, %p105
    %s107 = ssub.s32 %s10, %s17
    %p108 = scmp.eq.s32.totalorder %s107, 0
    %s110 = sadd.s32 %s109, 1
    %s111 = scalar_select %p108, %s109, %s110
    %p114 = pneg %p108
    %p115 = scmp.eq.s32.totalorder %s10, 1
    %p116 = por %p114, %p115
    %p117 = scmp.ne.s32.totalorder %s109, %s112
    %p118 = scmp.eq.s32.totalorder %s10, 0
    %p119 = por %p117, %p118
    %p120 = scmp.ne.s32.totalorder %s109, %s112
    %p121 = scmp.eq.s32.totalorder %s15, 1
    %p122 = por %p120, %p121
    %p123 = scmp.ne.s32.totalorder %s112, %s113
    %p124 = scmp.eq.s32.totalorder %s15, 0
    %p125 = por %p123, %p124
    %p126 = scmp.ne.s32.totalorder %s112, %s113
    %p127 = scmp.eq.s32.totalorder %s16, 1
    %p128 = por %p126, %p127
    %p130 = scmp.ne.s32.totalorder %s113, %s129
    %p131 = scmp.eq.s32.totalorder %s16, 0
    %p132 = por %p130, %p131
    %p133 = scmp.le.s32.totalorder 1, %s10
    %p134 = scmp.lt.s32.totalorder %s10, 3
    %p135 = pnand %p133, %p134
    %p136 = pneg %p135
    // Predicated region
    $region9: #{bottleneck_block.1} parent=5 // pred_check
      _
    $region10: #{bottleneck_block.1} parent=5 // pred_check_branch
      %138 = sbr.rel (%p135) target = $region12
    $region11: #{bottleneck_block.1} parent=5 // pred_region
      %s139 = ssub.s32 %s10, 1
      // Predicated region
      $region13: #{bottleneck_block.1} parent=11 // pred_check
        %p140 = pneg %p57
      $region14: #{bottleneck_block.1} parent=11 // pred_check_branch
        %142 = sbr.rel (%p140) target = $region16
      $region15: #{bottleneck_block.1} parent=11 // pred_region
        _
      $region16: #{bottleneck_block.1} parent=11 // pred_fallthru
        _
      // Predicated region
      $region17: #{bottleneck_block.1} parent=11 // pred_check
        %p143 = pneg %p78
      $region18: #{bottleneck_block.1} parent=11 // pred_check_branch
        %145 = sbr.rel (%p143) target = $region20
      $region19: #{bottleneck_block.1} parent=11 // pred_region
        _
      $region20: #{bottleneck_block.1} parent=11 // pred_fallthru
        _
      // Predicated region
      $region21: #{bottleneck_block.1} parent=11 // pred_check
        %p146 = pneg %p99
      $region22: #{bottleneck_block.1} parent=11 // pred_check_branch
        %148 = sbr.rel (%p146) target = $region24
      $region23: #{bottleneck_block.1} parent=11 // pred_region
        _
      $region24: #{bottleneck_block.1} parent=11 // pred_fallthru
        _
    $region12: #{bottleneck_block.1} parent=5 // pred_fallthru
      _
    %p149 = scmp.lt.s32.totalorder %s10, 2
    // Predicated region
    $region25: #{bottleneck_block.1} parent=5 // pred_check
      %p150 = pneg %p149
    $region26: #{bottleneck_block.1} parent=5 // pred_check_branch
      %152 = sbr.rel (%p150) target = $region28
    $region27: #{bottleneck_block.1} parent=5 // pred_region
      // Predicated region
      $region29: #{bottleneck_block.1} parent=27 // pred_check
        %p153 = pneg %p30
      $region30: #{bottleneck_block.1} parent=27 // pred_check_branch
        %155 = sbr.rel (%p153) target = $region32
      $region31: #{bottleneck_block.1} parent=27 // pred_region
        %p156 = scmp.lt.s32.totalorder %s10, 1
        %s157 = scalar_select %p156, %s10, 1
        %s158 = smul.addr %s157, 2
        %s159 = smul.addr %s158, 4
        %s160 = scalar_lea.vmem %s0, %s159
      $region32: #{bottleneck_block.1} parent=27 // pred_fallthru
        _
    $region28: #{bottleneck_block.1} parent=5 // pred_fallthru
      _
    %p161 = scmp.le.s32.totalorder 1, %s10
    %p162 = scmp.lt.s32.totalorder %s10, 3
    %p163 = pnand %p161, %p162
    %p164 = pneg %p163
    // Predicated region
    $region33: #{bottleneck_block.1} parent=5 // pred_check
      _
    $region34: #{bottleneck_block.1} parent=5 // pred_check_branch
      %166 = sbr.rel (%p163) target = $region36
    $region35: #{bottleneck_block.1} parent=5 // pred_region
      %s167 = ssub.s32 %s10, 1
      %p168 = scmp.lt.s32.totalorder %s15, 1
      %s169 = scalar_select %p168, %s15, 1
      %s170 = smul.addr %s169, 2
      %s171 = smul.addr %s170, 4
      %s172 = scalar_lea.vmem %s0, %s171
      %p173 = pneg %p36
      %p174 = pneg %p33
      %p175 = pneg %p57
      %p176 = pneg %p54
      %p177 = pneg %p78
      %p178 = pneg %p75
      %p179 = pneg %p99
      %p180 = pneg %p96
      %p181 = pneg %p125
      %p182 = pneg %p122
      %p183 = scmp.lt.s32.totalorder %s15, 1
      %s184 = scalar_select %p183, %s15, 1
      %s185 = smul.addr %s184, 2
      %s186 = smul.addr %s185, 8
      %s187 = scalar_lea.vmem %s4, %s186
      %p188 = scmp.lt.s32.totalorder %s15, 1
      %s189 = scalar_select %p188, %s15, 1
      %s190 = smul.addr %s189, 2
      %s191 = smul.addr %s190, 4
      %s192 = scalar_lea.vmem %s0, %s191
      %p193 = scmp.lt.s32.totalorder %s15, 1
      %s194 = scalar_select %p193, %s15, 1
      %s195 = smul.addr %s194, 2
      %s196 = smul.addr %s195, 8
      %s197 = scalar_lea.vmem %s4, %s196
      %v199 = vlaneseq
      %v200 = vand.u32 %v199, 127
      %v201 = vadd.s32 %v200, 128
      %v202 = vld [vmem:[%s3] sm:$0x3]
      %v203 = vld [vmem:[%s1] sm:$0xf]
      %v204 = vld [vmem:[%s1 + $0x4] sm:$0xf]
      %v205 = vld [vmem:[%s2] sm:$0xf]
      %v206 = vld [vmem:[%s2 + $0x4] sm:$0xf]
      %v207 = vld [vmem:[%s2 + $0x8] sm:$0xf]
      %v208 = vld [vmem:[%s2 + $0xc] sm:$0xf]
      %v209 = vld [vmem:[%s2 + $0x10] sm:$0x3]
      %v210 = vld [vmem:[%s192] sm:$0xff]
      %v211 = vmax.f32 %v210, 0.0
      %v213 = vcombine.high %v211, %v211
      %v215 = vpack.c.bf16 %v211, %v211
      %v216 = vpack.c.bf16 %v213, %v213
      %v219 = vunpack.c.l.b16 %v203
      %v220 = vunpack.c.l.b16 %v204
      %v221 = vpack.c.b16 %v220, %v219
      %vm222 = vcmask 31744
      %v224 = vsel %vm222, %v221, 0
      %vm226 = vcmask 1041408
      %v228 = vsel %vm226, %v215, 0
      %v231 = vsel %vm226, %v216, 0
      %233 = vmatprep.subr.bf16.mxu0 %v231
      %234 = vmatpush1.bf16.msra.mxu0 %v228
      %235 = vmatprep.subr.bf16.mxu0 0
      %236 = vmatpush1.bf16.msra.mxu0 0
      %237 = vmatprep.subr.bf16.mxu0 0
      %238 = vmatpush1.bf16.msra.mxu0 0
      %239 = vmatprep.subr.bf16.mxu0 0
      %240 = vmatpush1.bf16.msra.mxu0 0
      %241 = vmatprep.subr.bf16.mxu0 0
      %242 = vmatpush1.bf16.msra.mxu0 0
      %243 = vmatprep.subr.bf16.mxu0 0
      %244 = vmatpush1.bf16.msra.mxu0 0
      %245 = vmatprep.subr.bf16.mxu0 0
      %246 = vmatpush1.bf16.msra.mxu0 0
      %247 = vmatprep.subr.bf16.mxu0 0
      %248 = vmatpush1.bf16.msra.mxu0 0
      %249 = vmatprep.subr.bf16.mxu0 0
      %250 = vmatpush1.bf16.msra.mxu0 0
      %251 = vmatprep.subr.bf16.mxu0 0
      %252 = vmatpush1.bf16.msra.mxu0 0
      %253 = vmatprep.subr.bf16.mxu0 0
      %254 = vmatpush1.bf16.msra.mxu0 0
      %255 = vmatprep.subr.bf16.mxu0 0
      %256 = vmatpush1.bf16.msra.mxu0 0
      %257 = vmatprep.subr.bf16.mxu0 0
      %258 = vmatpush1.bf16.msra.mxu0 0
      %259 = vmatprep.subr.bf16.mxu0 0
      %260 = vmatpush1.bf16.msra.mxu0 0
      %261 = vmatprep.subr.bf16.mxu0 0
      %262 = vmatpush1.bf16.msra.mxu0 0
      %263 = vmatprep.subr.bf16.mxu0 0
      %264 = vmatpush1.bf16.msra.mxu0 0
      %265 = vmatprep.mubr.bf16.mxu0 0
      %266 = vmatmul.mubr.bf16.gmra.mrb[0].mxu0 %v224
      %v267 = vpop.f32.mrb[0].mxu0
      %v268 = vadd.f32 0.0, %v267
      %v269 = vpop.f32.mrb[0].mxu0
      %v270 = vadd.f32 0.0, %v269
      %v271 = vpop.f32.mrb[0].mxu0
      %v272 = vadd.f32 0.0, %v271
      %v273 = vpop.f32.mrb[0].mxu0
      %v274 = vadd.f32 0.0, %v273
      %275 = vdwg.mxu0
      %v276 = vmax.f32 %v268, 0.0
      %v277 = vmax.f32 %v270, 0.0
      %v278 = vmax.f32 %v272, 0.0
      %v279 = vmax.f32 %v274, 0.0
      %v280 = vpack.c.bf16 %v278, %v276
      %v281 = vpack.c.bf16 %v279, %v277
      %v287 = vunpack.c.l.b16 %v205
      %v288 = vunpack.c.l.b16 %v206
      %v289 = vunpack.c.l.b16 %v207
      %v290 = vunpack.c.l.b16 %v208
      %v291 = vunpack.c.l.b16 %v209
      %v292 = vpack.c.b16 %v288, %v287
      %v293 = vpack.c.b16 %v290, %v289
      %v294 = vpack.c.b16 %v291, %v291
      %vm295 = vcmask 130048
      %v297 = vsel %vm295, %v292, 0
      %v300 = vsel %vm295, %v293, 0
      %v303 = vsel %vm295, %v294, 0
      %305 = vmatprep.subr.bf16.mxu0 %v281
      %306 = vmatpush1.bf16.msra.mxu0 %v280
      %307 = vmatprep.subr.bf16.mxu0 0
      %308 = vmatpush1.bf16.msra.mxu0 0
      %309 = vmatprep.subr.bf16.mxu0 0
      %310 = vmatpush1.bf16.msra.mxu0 0
      %311 = vmatprep.subr.bf16.mxu0 0
      %312 = vmatpush1.bf16.msra.mxu0 0
      %313 = vmatprep.subr.bf16.mxu0 0
      %314 = vmatpush1.bf16.msra.mxu0 0
      %315 = vmatprep.subr.bf16.mxu0 0
      %316 = vmatpush1.bf16.msra.mxu0 0
      %317 = vmatprep.subr.bf16.mxu0 0
      %318 = vmatpush1.bf16.msra.mxu0 0
      %319 = vmatprep.subr.bf16.mxu0 0
      %320 = vmatpush1.bf16.msra.mxu0 0
      %321 = vmatprep.subr.bf16.mxu0 0
      %322 = vmatpush1.bf16.msra.mxu0 0
      %323 = vmatprep.subr.bf16.mxu0 0
      %324 = vmatpush1.bf16.msra.mxu0 0
      %325 = vmatprep.subr.bf16.mxu0 0
      %326 = vmatpush1.bf16.msra.mxu0 0
      %327 = vmatprep.subr.bf16.mxu0 0
      %328 = vmatpush1.bf16.msra.mxu0 0
      %329 = vmatprep.subr.bf16.mxu0 0
      %330 = vmatpush1.bf16.msra.mxu0 0
      %331 = vmatprep.subr.bf16.mxu0 0
      %332 = vmatpush1.bf16.msra.mxu0 0
      %333 = vmatprep.subr.bf16.mxu0 0
      %334 = vmatpush1.bf16.msra.mxu0 0
      %335 = vmatprep.subr.bf16.mxu0 0
      %336 = vmatpush1.bf16.msra.mxu0 0
      %337 = vmatprep.mubr.bf16.mxu0 0
      %338 = vmatmul.mubr.bf16.gmra.mrb[0].mxu0 %v297
      %v339 = vpop.f32.mrb[0].mxu0
      %v340 = vadd.f32 0.0, %v339
      %v341 = vpop.f32.mrb[0].mxu0
      %v342 = vadd.f32 0.0, %v341
      %v343 = vpop.f32.mrb[0].mxu0
      %v344 = vadd.f32 0.0, %v343
      %v345 = vpop.f32.mrb[0].mxu0
      %v346 = vadd.f32 0.0, %v345
      %347 = vmatprep.mubr.bf16.mxu0 0
      %348 = vmatmul.mubr.bf16.gmra.mrb[0].mxu0 %v300
      %v349 = vpop.f32.mrb[0].mxu0
      %v350 = vadd.f32 0.0, %v349
      %v351 = vpop.f32.mrb[0].mxu0
      %v352 = vadd.f32 0.0, %v351
      %v353 = vpop.f32.mrb[0].mxu0
      %v354 = vadd.f32 0.0, %v353
      %v355 = vpop.f32.mrb[0].mxu0
      %v356 = vadd.f32 0.0, %v355
      %357 = vmatprep.mubr.bf16.mxu0 0
      %358 = vmatmul.mubr.bf16.gmra.mrb[0].mxu0 %v303
      %v359 = vpop.f32.mrb[0].mxu0
      %v360 = vadd.f32 0.0, %v359
      %v361 = vpop.f32.mrb[0].mxu0
      %v362 = vadd.f32 0.0, %v361
      %v363 = vpop.f32.mrb[0].mxu0
      %v364 = vpop.f32.mrb[0].mxu0
      %365 = vdwg.mxu0
      %368 = vrot.lane.b32.xlu0 %v340, 17
      %v369 = vpop.permute.xlu0 %368
      %370 = vrot.lane.b32.xlu0 %v342, 17
      %v371 = vpop.permute.xlu0 %370
      %vm372 = vcmask 138240
      %v373 = vsel %vm372, %v369, %v371
      %v376 = vsel %vm372, 0.0, %v369
      %vm377 = vcmp.ge.s32.totalorder %v200, 16
      %vm378 = vcmp.ge.s32.totalorder %v201, 16
      %vm379 = vcmp.ge.s32.totalorder %v202, 1
      %v380 = vsel %vm379, 1, 0
      %v381 = vlaneseq
      %v382 = vshrl.u32 %v381, 7
      %v383 = vsub.s32 0, %v382
      %v384 = vrot.slane %v380, %v383
      %v385 = vlaneseq
      %v386 = vshrl.u32 %v385, 7
      %v387 = vsub.s32 1, %v386
      %v388 = vrot.slane %v380, %v387
      %vm389 = vcmp.ne.s32.totalorder %v384, 0
      %vm390 = vcmp.ne.s32.totalorder %v388, 0
      %vm391 = vmand %vm377, %vm389
      %vm392 = vmand %vm378, %vm390
      %v393 = vsel %vm391, 1, 0
      %v394 = vsel %vm392, 1, 0
      %v395 = vlaneseq
      %v396 = vshrl.u32 %v395, 7
      %v397 = vsub.s32 0, %v396
      %v398 = vrot.slane %v393, %v397
      %v399 = vlaneseq
      %v400 = vshrl.u32 %v399, 7
      %v401 = vsub.s32 0, %v400
      %v402 = vrot.slane %v394, %v401
      %vm403 = vcmp.eq.s32.totalorder %v398, 1
      %vm404 = vcmp.eq.s32.totalorder %v402, 1
      %v405 = vsel %vm403, %v376, 0.0
      %v406 = vsel %vm404, %v373, 0.0
      %v407 = vrot.slane %v340, 4
      %v408 = vrot.slane %v342, 4
      %409 = vrot.lane.b32.xlu0 %v407, 16
      %v410 = vpop.permute.xlu0 %409
      %411 = vrot.lane.b32.xlu0 %v408, 16
      %v412 = vpop.permute.xlu0 %411
      %v413 = vsel %vm295, %v410, %v412
      %v416 = vsel %vm295, 0.0, %v410
      %v417 = vsel %vm377, 1, 0
      %v418 = vsel %vm378, 1, 0
      %vm419 = vcmp.eq.s32.totalorder %v417, 1
      %vm420 = vcmp.eq.s32.totalorder %v418, 1
      %v421 = vsel %vm419, %v416, 0.0
      %v422 = vsel %vm420, %v413, 0.0
      %v423 = vadd.f32 %v405, %v421
      %v424 = vadd.f32 %v406, %v422
      %427 = vrot.lane.b32.xlu0 %v344, 15
      %v428 = vpop.permute.xlu0 %427
      %429 = vrot.lane.b32.xlu0 %v346, 15
      %v430 = vpop.permute.xlu0 %429
      %vm431 = vcmask 121856
      %v432 = vsel %vm431, %v428, %v430
      %v435 = vsel %vm431, 0.0, %v428
      %vm436 = vcmp.le.s32.totalorder %v202, 14
      %v437 = vsel %vm436, 1, 0
      %v438 = vlaneseq
      %v439 = vshrl.u32 %v438, 7
      %v440 = vsub.s32 0, %v439
      %v441 = vrot.slane %v437, %v440
      %v442 = vlaneseq
      %v443 = vshrl.u32 %v442, 7
      %v444 = vsub.s32 1, %v443
      %v445 = vrot.slane %v437, %v444
      %vm446 = vcmp.ne.s32.totalorder %v441, 0
      %vm447 = vcmp.ne.s32.totalorder %v445, 0
      %vm448 = vmand %vm377, %vm446
      %vm449 = vmand %vm378, %vm447
      %v450 = vsel %vm448, 1, 0
      %v451 = vsel %vm449, 1, 0
      %v452 = vlaneseq
      %v453 = vshrl.u32 %v452, 7
      %v454 = vsub.s32 0, %v453
      %v455 = vrot.slane %v450, %v454
      %v456 = vlaneseq
      %v457 = vshrl.u32 %v456, 7
      %v458 = vsub.s32 0, %v457
      %v459 = vrot.slane %v451, %v458
      %vm460 = vcmp.eq.s32.totalorder %v455, 1
      %vm461 = vcmp.eq.s32.totalorder %v459, 1
      %v462 = vsel %vm460, %v435, 0.0
      %v463 = vsel %vm461, %v432, 0.0
      %v464 = vadd.f32 %v423, %v462
      %v465 = vadd.f32 %v424, %v463
      %v466 = vrot.slane %v344, 4
      %v467 = vrot.slane %v346, 4
      %468 = vrot.lane.b32.xlu0 %v466, 1
      %v469 = vpop.permute.xlu0 %468
      %470 = vrot.lane.b32.xlu0 %v467, 1
      %v471 = vpop.permute.xlu0 %470
      %vm472 = vcmask 7168
      %v473 = vsel %vm472, %v469, %v471
      %v476 = vsel %vm472, 0.0, %v469
      %vm477 = vcmp.eq.s32.totalorder %v384, 1
      %vm478 = vcmp.eq.s32.totalorder %v388, 1
      %v479 = vsel %vm477, %v476, 0.0
      %v480 = vsel %vm478, %v473, 0.0
      %v481 = vadd.f32 %v464, %v479
      %v482 = vadd.f32 %v465, %v480
      %v483 = vadd.f32 %v481, %v350
      %v484 = vadd.f32 %v482, %v352
      %487 = vrot.lane.b32.xlu0 %v350, 127
      %v488 = vpop.permute.xlu0 %487
      %489 = vrot.lane.b32.xlu0 %v352, 127
      %v490 = vpop.permute.xlu0 %489
      %vm491 = vcmask 1039360
      %v492 = vsel %vm491, %v488, %v490
      %v495 = vsel %vm491, %v490, 0.0
      %vm496 = vcmp.eq.s32.totalorder %v441, 1
      %vm497 = vcmp.eq.s32.totalorder %v445, 1
      %v498 = vsel %vm496, %v492, 0.0
      %v499 = vsel %vm497, %v495, 0.0
      %v502 = vrot.slane %v498, 4
      %v503 = vrot.slane %v499, 4
      %v506 = vadd.f32 %v483, %v502
      %v507 = vadd.f32 %v484, %v503
      %510 = vrot.lane.b32.xlu0 %v354, 113
      %v511 = vpop.permute.xlu0 %510
      %512 = vrot.lane.b32.xlu0 %v356, 113
      %v513 = vpop.permute.xlu0 %512
      %vm514 = vcmask 924672
      %v515 = vsel %vm514, %v511, %v513
      %v518 = vsel %vm514, %v513, 0.0
      %vm519 = vcmp.lt.s32.totalorder %v200, 240
      %vm520 = vcmp.lt.s32.totalorder %v201, 240
      %vm521 = vmand %vm519, %vm389
      %vm522 = vmand %vm520, %vm390
      %v523 = vsel %vm521, 1, 0
      %v524 = vsel %vm522, 1, 0
      %v525 = vlaneseq
      %v526 = vshrl.u32 %v525, 7
      %v527 = vsub.s32 0, %v526
      %v528 = vrot.slane %v523, %v527
      %v529 = vlaneseq
      %v530 = vshrl.u32 %v529, 7
      %v531 = vsub.s32 0, %v530
      %v532 = vrot.slane %v524, %v531
      %vm533 = vcmp.eq.s32.totalorder %v528, 1
      %vm534 = vcmp.eq.s32.totalorder %v532, 1
      %v535 = vsel %vm533, %v515, 0.0
      %v536 = vsel %vm534, %v518, 0.0
      %v537 = vadd.f32 %v506, %v535
      %v538 = vadd.f32 %v507, %v536
      %539 = vrot.lane.b32.xlu0 %v354, 112
      %v540 = vpop.permute.xlu0 %539
      %541 = vrot.lane.b32.xlu0 %v356, 112
      %v542 = vpop.permute.xlu0 %541
      %vm543 = vcmask 916480
      %v544 = vsel %vm543, %v540, %v542
      %v547 = vsel %vm543, %v542, 0.0
      %v548 = vsel %vm519, 1, 0
      %v549 = vsel %vm520, 1, 0
      %vm550 = vcmp.eq.s32.totalorder %v548, 1
      %vm551 = vcmp.eq.s32.totalorder %v549, 1
      %v552 = vsel %vm550, %v544, 0.0
      %v553 = vsel %vm551, %v547, 0.0
      %v556 = vrot.slane %v552, 4
      %v557 = vrot.slane %v553, 4
      %v560 = vadd.f32 %v537, %v556
      %v561 = vadd.f32 %v538, %v557
      %564 = vrot.lane.b32.xlu0 %v360, 111
      %v565 = vpop.permute.xlu0 %564
      %566 = vrot.lane.b32.xlu0 %v362, 111
      %v567 = vpop.permute.xlu0 %566
      %vm568 = vcmask 908288
      %v569 = vsel %vm568, %v565, %v567
      %v572 = vsel %vm568, %v567, 0.0
      %vm573 = vmand %vm519, %vm446
      %vm574 = vmand %vm520, %vm447
      %v575 = vsel %vm573, 1, 0
      %v576 = vsel %vm574, 1, 0
      %v577 = vlaneseq
      %v578 = vshrl.u32 %v577, 7
      %v579 = vsub.s32 0, %v578
      %v580 = vrot.slane %v575, %v579
      %v581 = vlaneseq
      %v582 = vshrl.u32 %v581, 7
      %v583 = vsub.s32 0, %v582
      %v584 = vrot.slane %v576, %v583
      %vm585 = vcmp.eq.s32.totalorder %v580, 1
      %vm586 = vcmp.eq.s32.totalorder %v584, 1
      %v587 = vsel %vm585, %v569, 0.0
      %v588 = vsel %vm586, %v572, 0.0
      %v589 = vadd.f32 %v560, %v587
      %v590 = vadd.f32 %v561, %v588
      %v592 = vcombine.high %v210, %v210
      %594 = vst [vmem:[%s197] sm:$0xf] %v210
      %595 = vst [vmem:[%s197 + $0x8] sm:$0xf] %v592
      %v598 = vrot.slane %v589, 4
      %v599 = vrot.slane %v590, 4
      %602 = vst [vmem:[%s197] sm:$0xf0] %v598
      %603 = vst [vmem:[%s197 + $0x8] sm:$0xf0] %v599
      %p604 = scmp.lt.s32.totalorder %s15, 1
      %s605 = scalar_select %p604, %s15, 1
      %s606 = smul.addr %s605, 2
      %s607 = smul.addr %s606, 8
      %s608 = scalar_lea.vmem %s4, %s607
      // Predicated region
      $region37: #{bottleneck_block.1} parent=35 // pred_check
        %p609 = pneg %p122
      $region38: #{bottleneck_block.1} parent=35 // pred_check_branch
        %611 = sbr.rel (%p609) target = $region40
      $region39: #{bottleneck_block.1} parent=35 // pred_region
        _
      $region40: #{bottleneck_block.1} parent=35 // pred_fallthru
        _
    $region36: #{bottleneck_block.1} parent=5 // pred_fallthru
      _
    %p612 = scmp.le.s32.totalorder 2, %s10
    // Predicated region
    $region41: #{bottleneck_block.1} parent=5 // pred_check
      %p613 = pneg %p612
    $region42: #{bottleneck_block.1} parent=5 // pred_check_branch
      %615 = sbr.rel (%p613) target = $region44
    $region43: #{bottleneck_block.1} parent=5 // pred_region
      %s616 = ssub.s32 %s10, 2
      // Predicated region
      $region45: #{bottleneck_block.1} parent=43 // pred_check
        %p617 = pneg %p128
      $region46: #{bottleneck_block.1} parent=43 // pred_check_branch
        %619 = sbr.rel (%p617) target = $region48
      $region47: #{bottleneck_block.1} parent=43 // pred_region
        %p620 = scmp.lt.s32.totalorder %s16, 1
        %s621 = scalar_select %p620, %s16, 1
        %s622 = smul.addr %s621, 2
        %s623 = smul.addr %s622, 8
        %s624 = scalar_lea.vmem %s4, %s623
      $region48: #{bottleneck_block.1} parent=43 // pred_fallthru
        _
    $region44: #{bottleneck_block.1} parent=5 // pred_fallthru
      _
  $region6: #{bottleneck_block.1} parent=0 // loop_footer
    %s14 = sadd.s32 1, %s10
  $region7: #{bottleneck_block.1} parent=0 // loop_footer_branch
    %9 = sbr.rel target = $region3
  $region8: #{bottleneck_block.1} parent=0 // loop_exit
    _

</llo_original>
